<compile_context>
chip_gen: v7x
topology: tpu7x:2x2x1
jax: 0.10.0
libtpu: 0.0.40
codegen_flags: <defaults>
</compile_context>

<pallas_src>
import functools

import jax
import jax.numpy as jnp
import numpy as np
from jax import lax
from jax.experimental import pallas as pl
from jax.experimental.pallas import tpu as pltpu

_VMEM_LIMIT_BYTES = 32 * 1024 * 1024  # > v5e default (16 MiB), <= v6e/v7x scoped default


def _compiler_params(n_grid_axes):
    return pltpu.CompilerParams(
        dimension_semantics=("parallel",) * n_grid_axes,
        vmem_limit_bytes=_VMEM_LIMIT_BYTES,
    )


def _choose_row_tile(n, target=256):
    """Largest row tile <= target that evenly divides n (prefer 128/256-aligned)."""
    if n <= target:
        return n
    for t in (target, 128, 64, 32, 16, 8):
        if n % t == 0:
            return t
    return n


# ---------------------------------------------------------------------------
# Kernel 1: T5 RMSNorm + fused QKV projection, tiled over token rows.
# ---------------------------------------------------------------------------
def _rmsnorm_qkv_kernel(x_ref, lnw_ref, wqkv_ref, q_ref, k_ref, v_ref, *, eps, inner):
    x = x_ref[...].astype(jnp.float32)                      # (T, D)
    var = jnp.mean(x * x, axis=-1, keepdims=True)           # T5 RMSNorm (no mean sub)
    xn = x * lax.rsqrt(var + eps) * lnw_ref[...]             # (T, D) * (1, D), f32
    h = jnp.dot(xn.astype(jnp.bfloat16), wqkv_ref[...],      # bf16 MXU, f32 accum
                preferred_element_type=jnp.float32)           # (T, 3*inner)
    q_ref[...] = h[:, :inner].astype(q_ref.dtype)
    k_ref[...] = h[:, inner:2 * inner].astype(k_ref.dtype)
    v_ref[...] = h[:, 2 * inner:].astype(v_ref.dtype)


def _rmsnorm_qkv(xf, ln_w, wqkv, *, eps):
    N, D = xf.shape
    inner = wqkv.shape[1] // 3
    tile = _choose_row_tile(N)
    out = jax.ShapeDtypeStruct((N, inner), jnp.bfloat16)
    return pl.pallas_call(
        functools.partial(_rmsnorm_qkv_kernel, eps=eps, inner=inner),
        out_shape=(out, out, out),
        grid=(N // tile,),
        in_specs=[
            pl.BlockSpec((tile, D), lambda i: (i, 0)),
            pl.BlockSpec((1, D), lambda i: (0, 0)),
            # TODO(synk): pipeline_mode=pl.Buffered(1) would avoid double-buffering this
            # grid-invariant weight block; left out for compile robustness.
            pl.BlockSpec((D, 3 * inner), lambda i: (0, 0)),
        ],
        out_specs=(
            pl.BlockSpec((tile, inner), lambda i: (i, 0)),
            pl.BlockSpec((tile, inner), lambda i: (i, 0)),
            pl.BlockSpec((tile, inner), lambda i: (i, 0)),
        ),
        compiler_params=_compiler_params(1),
    )(xf, ln_w.reshape(1, D), wqkv)


# ---------------------------------------------------------------------------
# Kernel 2: attention per (batch, head): scores + bias -> f32 softmax -> context.
# TODO(synk): for very long S, tile the q axis flash-style; full-S blocks are fine
#             at encoder sequence lengths (S x S f32 scores stay tiny in VMEM).
# ---------------------------------------------------------------------------
def _attention_kernel(q_ref, k_ref, v_ref, bias_ref, o_ref):
    q = q_ref[...]                                           # (S, dkv) bf16
    k = k_ref[...]
    v = v_ref[...]
    # scores = q @ k^T + position_bias  (NO 1/sqrt(d) scaling in T5/Switch)
    scores = lax.dot_general(q, k, (((1,), (1,)), ((), ())),
                             preferred_element_type=jnp.float32)     # (S, S) f32
    scores = scores + bias_ref[...].astype(jnp.float32)
    m = jnp.max(scores, axis=-1, keepdims=True)              # stable f32 softmax
    e = jnp.exp(scores - m)
    p = e / jnp.sum(e, axis=-1, keepdims=True)
    ctx = jnp.dot(p.astype(jnp.bfloat16), v,                  # bf16 MXU, f32 accum
                  preferred_element_type=jnp.float32)
    o_ref[...] = ctx.astype(o_ref.dtype)


def _attention(q, k, v, bias):
    B, H, S, dkv = q.shape
    if bias.shape[0] == 1:
        bias_map = lambda b, h: (0, h, 0, 0)   # broadcast bias over batch, no copy
    else:
        bias_map = lambda b, h: (b, h, 0, 0)
    qkv_spec = pl.BlockSpec((None, None, S, dkv), lambda b, h: (b, h, 0, 0))
    return pl.pallas_call(
        _attention_kernel,
        out_shape=jax.ShapeDtypeStruct((B, H, S, dkv), jnp.bfloat16),
        grid=(B, H),
        in_specs=[
            qkv_spec,
            qkv_spec,
            qkv_spec,
            pl.BlockSpec((None, None, S, S), bias_map),
        ],
        out_specs=pl.BlockSpec((None, None, S, dkv), lambda b, h: (b, h, 0, 0)),
        compiler_params=_compiler_params(2),
    )(q, k, v, bias)


# ---------------------------------------------------------------------------
# Kernel 3: output projection + residual add, tiled over token rows.
# ---------------------------------------------------------------------------
def _o_proj_residual_kernel(ctx_ref, wo_ref, x_ref, o_ref):
    y = jnp.dot(ctx_ref[...], wo_ref[...], preferred_element_type=jnp.float32)
    o_ref[...] = (x_ref[...].astype(jnp.float32) + y).astype(o_ref.dtype)


def _o_proj_residual(ctx, wo, xf):
    N, inner = ctx.shape
    D = wo.shape[1]
    tile = _choose_row_tile(N)
    return pl.pallas_call(
        _o_proj_residual_kernel,
        out_shape=jax.ShapeDtypeStruct((N, D), xf.dtype),
        grid=(N // tile,),
        in_specs=[
            pl.BlockSpec((tile, inner), lambda i: (i, 0)),
            pl.BlockSpec((inner, D), lambda i: (0, 0)),
            pl.BlockSpec((tile, D), lambda i: (i, 0)),
        ],
        out_specs=pl.BlockSpec((tile, D), lambda i: (i, 0)),
        compiler_params=_compiler_params(1),
    )(ctx, wo, xf)


# ---------------------------------------------------------------------------
# SwitchEncoderBlock wrapper
# ---------------------------------------------------------------------------
def switch_encoder_block(x, position_bias, params, *, num_heads, eps=1e-6):
    B, S, D = x.shape
    inner = params["wq"].shape[1]
    dkv = inner // num_heads
    N = B * S
    xf = x.reshape(N, D)

    # One-time weight prep (cache these in real use): fused bf16 QKV weight + bf16 O.
    wqkv = jnp.concatenate([params["wq"], params["wk"], params["wv"]],
                           axis=1).astype(jnp.bfloat16)
    wo_bf = params["wo"].astype(jnp.bfloat16)

    q2, k2, v2 = _rmsnorm_qkv(xf, params["ln_w"], wqkv, eps=eps)

    def split_heads(t):   # (N, inner) -> (B, H, S, dkv)
        return t.reshape(B, S, num_heads, dkv).transpose(0, 2, 1, 3)

    ctx = _attention(split_heads(q2), split_heads(k2), split_heads(v2), position_bias)
    ctx = ctx.transpose(0, 2, 1, 3).reshape(N, inner)          # merge heads

    out = _o_proj_residual(ctx, wo_bf, xf)
    return out.reshape(B, S, D)


# ---------------------------------------------------------------------------
# Pure-JAX reference (mirrors the PyTorch forward, with the same bf16 MXU casts)
# ---------------------------------------------------------------------------
def ref_switch_encoder_block(x, position_bias, params, *, num_heads, eps=1e-6):
    B, S, D = x.shape
    inner = params["wq"].shape[1]
    dkv = inner // num_heads

    xf = x.astype(jnp.float32)
    var = jnp.mean(xf * xf, axis=-1, keepdims=True)
    xn = (xf * lax.rsqrt(var + eps) * params["ln_w"]).astype(jnp.bfloat16)

    def proj(w):
        return jnp.dot(xn, w.astype(jnp.bfloat16),
                       preferred_element_type=jnp.float32).astype(jnp.bfloat16)

    def split(t):
        return t.reshape(B, S, num_heads, dkv).transpose(0, 2, 1, 3)

    q, k, v = split(proj(params["wq"])), split(proj(params["wk"])), split(proj(params["wv"]))
    scores = jnp.einsum("bhqd,bhkd->bhqk", q, k,
                        preferred_element_type=jnp.float32) + position_bias
    p = jax.nn.softmax(scores.astype(jnp.float32), axis=-1)
    ctx = jnp.einsum("bhqk,bhkd->bhqd", p.astype(jnp.bfloat16), v,
                     preferred_element_type=jnp.float32).astype(jnp.bfloat16)
    ctx = ctx.transpose(0, 2, 1, 3).reshape(B, S, inner)
    y = jnp.dot(ctx, params["wo"].astype(jnp.bfloat16),
                preferred_element_type=jnp.float32)
    return (xf + y).astype(x.dtype)


# ---------------------------------------------------------------------------
if __name__ == "__main__":
    # Small but lane-aligned config (d_model / inner_dim multiples of 128).
    B, S = 2, 128
    D_MODEL, NUM_HEADS, D_KV = 128, 4, 32
    INNER = NUM_HEADS * D_KV
    EPS = 1e-6

    key = jax.random.PRNGKey(0)
    ks = jax.random.split(key, 8)

    x = jax.random.normal(ks[0], (B, S, D_MODEL), dtype=jnp.float32)
    # Relative-attention position bias as HF produces it: (1, num_heads, S, S).
    position_bias = 0.1 * jax.random.normal(ks[1], (1, NUM_HEADS, S, S), jnp.float32)

    params = {
        "ln_w": 1.0 + 0.1 * jax.random.normal(ks[2], (D_MODEL,), jnp.float32),
        # nn.Linear weights stored pre-transposed as (in_features, out_features)
        "wq": 0.05 * jax.random.normal(ks[3], (D_MODEL, INNER), jnp.float32),
        "wk": 0.05 * jax.random.normal(ks[4], (D_MODEL, INNER), jnp.float32),
        "wv": 0.05 * jax.random.normal(ks[5], (D_MODEL, INNER), jnp.float32),
        "wo": 0.05 * jax.random.normal(ks[6], (INNER, D_MODEL), jnp.float32),
    }

    out = switch_encoder_block(x, position_bias, params, num_heads=NUM_HEADS, eps=EPS)
    jax.block_until_ready(out)

    ref = ref_switch_encoder_block(x, position_bias, params, num_heads=NUM_HEADS, eps=EPS)
    np.testing.assert_allclose(np.asarray(out), np.asarray(ref), rtol=1e-2, atol=1e-2)

    print("KERNEL_OK")
</pallas_src>

<mosaic_0001>
module attributes {stable_mosaic.version = 11 : i64} {
  func.func @_rmsnorm_qkv_kernel(%arg0: i32, %arg1: memref<256x128xf32, #tpu.memory_space<vmem>>, %arg2: memref<1x128xf32, #tpu.memory_space<vmem>>, %arg3: memref<128x384xbf16, #tpu.memory_space<vmem>>, %arg4: memref<256x128xbf16, #tpu.memory_space<vmem>>, %arg5: memref<256x128xbf16, #tpu.memory_space<vmem>>, %arg6: memref<256x128xbf16, #tpu.memory_space<vmem>>) attributes {dimension_semantics = [#tpu.dimension_semantics<parallel>], iteration_bounds = array<i64: 1>, scalar_prefetch = 0 : i64, scratch_operands = 0 : i64, tpu.core_type = #tpu.core_type<tc>, window_params = [{transform_indices = @transform_0, window_bounds = array<i64: 256, 128>}, {pipeline_mode = #tpu.pipeline_mode<synchronous>, transform_indices = @transform_1, window_bounds = array<i64: 1, 128>}, {pipeline_mode = #tpu.pipeline_mode<synchronous>, transform_indices = @transform_2, window_bounds = array<i64: 128, 384>}, {transform_indices = @transform_3, window_bounds = array<i64: 256, 128>}, {transform_indices = @transform_4, window_bounds = array<i64: 256, 128>}, {transform_indices = @transform_5, window_bounds = array<i64: 256, 128>}]} {
    %c0 = arith.constant 0 : index
    %c0_0 = arith.constant 0 : index
    %0 = vector.load %arg1[%c0, %c0_0] : memref<256x128xf32, #tpu.memory_space<vmem>>, vector<256x128xf32>
    %1 = arith.mulf %0, %0 : vector<256x128xf32>
    %cst = arith.constant dense<0.000000e+00> : vector<256xf32>
    %2 = vector.multi_reduction <add>, %1, %cst [1] : vector<256x128xf32> to vector<256xf32>
    %3 = vector.shape_cast %2 : vector<256xf32> to vector<256x1xf32>
    %cst_1 = arith.constant 1.280000e+02 : f32
    %4 = vector.broadcast %cst_1 : f32 to vector<256x1xf32>
    %5 = arith.divf %3, %4 : vector<256x1xf32>
    %cst_2 = arith.constant 9.99999997E-7 : f32
    %6 = vector.broadcast %cst_2 : f32 to vector<256x1xf32>
    %7 = arith.addf %5, %6 : vector<256x1xf32>
    %8 = math.rsqrt %7 : vector<256x1xf32>
    %9 = vector.broadcast %8 : vector<256x1xf32> to vector<256x128xf32>
    %10 = arith.mulf %0, %9 : vector<256x128xf32>
    %c0_3 = arith.constant 0 : index
    %c0_4 = arith.constant 0 : index
    %11 = vector.load %arg2[%c0_3, %c0_4] : memref<1x128xf32, #tpu.memory_space<vmem>>, vector<1x128xf32>
    %12 = vector.broadcast %11 : vector<1x128xf32> to vector<256x128xf32>
    %13 = arith.mulf %10, %12 : vector<256x128xf32>
    %14 = arith.truncf %13 : vector<256x128xf32> to vector<256x128xbf16>
    %c0_5 = arith.constant 0 : index
    %c0_6 = arith.constant 0 : index
    %15 = vector.load %arg3[%c0_5, %c0_6] : memref<128x384xbf16, #tpu.memory_space<vmem>>, vector<128x384xbf16>
    %cst_7 = arith.constant dense<0.000000e+00> : vector<256x384xf32>
    %16 = tpu.matmul %14, %15, %cst_7 {dimension_numbers = #tpu.dot_dimension_numbers<[1], [0], [0], [1], [0, 0, 1, 1], [], []>} : vector<256x128xbf16>, vector<128x384xbf16>, vector<256x384xf32> -> vector<256x384xf32>
    %17 = vector.extract_strided_slice %16 {offsets = [0, 0], sizes = [256, 128], strides = [1, 1]} : vector<256x384xf32> to vector<256x128xf32>
    %18 = arith.truncf %17 : vector<256x128xf32> to vector<256x128xbf16>
    %c0_8 = arith.constant 0 : index
    %c0_9 = arith.constant 0 : index
    %19 = vector.load %arg4[%c0_8, %c0_9] : memref<256x128xbf16, #tpu.memory_space<vmem>>, vector<256x128xbf16>
    tpu.vector_store %arg4[%c0_8, %c0_9], %18 {strides = array<i32>} : memref<256x128xbf16, #tpu.memory_space<vmem>>, vector<256x128xbf16>,
    %20 = vector.extract_strided_slice %16 {offsets = [0, 128], sizes = [256, 128], strides = [1, 1]} : vector<256x384xf32> to vector<256x128xf32>
    %21 = arith.truncf %20 : vector<256x128xf32> to vector<256x128xbf16>
    %c0_10 = arith.constant 0 : index
    %c0_11 = arith.constant 0 : index
    %22 = vector.load %arg5[%c0_10, %c0_11] : memref<256x128xbf16, #tpu.memory_space<vmem>>, vector<256x128xbf16>
    tpu.vector_store %arg5[%c0_10, %c0_11], %21 {strides = array<i32>} : memref<256x128xbf16, #tpu.memory_space<vmem>>, vector<256x128xbf16>,
    %23 = vector.extract_strided_slice %16 {offsets = [0, 256], sizes = [256, 128], strides = [1, 1]} : vector<256x384xf32> to vector<256x128xf32>
    %24 = arith.truncf %23 : vector<256x128xf32> to vector<256x128xbf16>
    %c0_12 = arith.constant 0 : index
    %c0_13 = arith.constant 0 : index
    %25 = vector.load %arg6[%c0_12, %c0_13] : memref<256x128xbf16, #tpu.memory_space<vmem>>, vector<256x128xbf16>
    tpu.vector_store %arg6[%c0_12, %c0_13], %24 {strides = array<i32>} : memref<256x128xbf16, #tpu.memory_space<vmem>>, vector<256x128xbf16>,
    return
  }
  func.func @transform_0(%arg0: i32) -> (i32, i32) {
    %c0_i32 = arith.constant 0 : i32
    %c0_i32_0 = arith.constant 0 : i32
    return %arg0, %c0_i32 : i32, i32
  }
  func.func @transform_1(%arg0: i32) -> (i32, i32) {
    %c0_i32 = arith.constant 0 : i32
    %c0_i32_0 = arith.constant 0 : i32
    %c0_i32_1 = arith.constant 0 : i32
    return %c0_i32, %c0_i32_0 : i32, i32
  }
  func.func @transform_2(%arg0: i32) -> (i32, i32) {
    %c0_i32 = arith.constant 0 : i32
    %c0_i32_0 = arith.constant 0 : i32
    %c0_i32_1 = arith.constant 0 : i32
    return %c0_i32, %c0_i32_0 : i32, i32
  }
  func.func @transform_3(%arg0: i32) -> (i32, i32) {
    %c0_i32 = arith.constant 0 : i32
    %c0_i32_0 = arith.constant 0 : i32
    return %arg0, %c0_i32 : i32, i32
  }
  func.func @transform_4(%arg0: i32) -> (i32, i32) {
    %c0_i32 = arith.constant 0 : i32
    %c0_i32_0 = arith.constant 0 : i32
    return %arg0, %c0_i32 : i32, i32
  }
  func.func @transform_5(%arg0: i32) -> (i32, i32) {
    %c0_i32 = arith.constant 0 : i32
    %c0_i32_0 = arith.constant 0 : i32
    return %arg0, %c0_i32 : i32, i32
  }
}

</mosaic_0001>

<llo_original>
// kernel: tpu_custom_call.1
$region0: #{tpu_custom_call.1}
  #allocation0 [shape = 'u32[]', space=smem, size = 0x4, offset = 0x4, fixed_abs, tag = 'smem constant byte address 0x4 - core index']
  #allocation1 [shape = 'u32[144,128]{1,0:T(1,128)}', space=vmem, size = 0x12000, scoped, tag = 'internal scratch']
  %s0 = inlined_call_operand.hbm [shape: f32[256,128], index: 0, kind: input, shape index: {}]
  %s1 = inlined_call_operand.vmem [shape: f32[1,128], index: 1, kind: input, shape index: {}]
  %s2 = inlined_call_operand.hbm [shape: bf16[128,384], index: 2, kind: input, shape index: {}]
  %s3 = inlined_call_operand.hbm [shape: bf16[256,128], index: 3, kind: output, shape index: {0}]
  %s4 = inlined_call_operand.hbm [shape: bf16[256,128], index: 4, kind: output, shape index: {1}]
  %s5 = inlined_call_operand.hbm [shape: bf16[256,128], index: 5, kind: output, shape index: {2}]
  %6 = xla_tuple %s3, %s4, %s5
  %s7 = sld [smem:[#allocation0]]
  $region46: #{tpu_custom_call.1} parent=0
    _
  %s9 = ssub.s32 1, %s7
  %s10 = scalar_select 0, %s9, %s7
  $region1: #{tpu_custom_call.1} parent=0
    #allocation2 [shape = 'u8[131072]{0}', space=vmem, size = 0x20000, scoped, tag = 'input window, operand 0, single buffered']
    #allocation3 [shape = 's32[1]{0}', space=sflag, size = 0x4, scoped, tag = 'scoped memory for tpu_custom_call.1']
    #allocation4 [shape = 's32[1]{0}', space=sflag, size = 0x4, scoped, tag = 'scoped memory for tpu_custom_call.1']
    #allocation5 [shape = 'u8[98304]{0}', space=vmem, size = 0x18000, scoped, tag = 'input window, operand 2, single buffered']
    #allocation6 [shape = 's32[1]{0}', space=sflag, size = 0x4, scoped, tag = 'scoped memory for tpu_custom_call.1']
    #allocation7 [shape = 'u8[65536]{0}', space=vmem, size = 0x10000, scoped, tag = 'output window, operand 0, single buffered']
    #allocation8 [shape = 'u8[65536]{0}', space=vmem, size = 0x10000, scoped, tag = 'output window, operand 1, single buffered']
    #allocation9 [shape = 's32[1]{0}', space=sflag, size = 0x4, scoped, tag = 'scoped memory for tpu_custom_call.1']
    #allocation10 [shape = 'u8[65536]{0}', space=vmem, size = 0x10000, scoped, tag = 'output window, operand 2, single buffered']
    %11 = vsyncpa [#allocation3], 0
    %12 = vsyncpa [#allocation6], 0
    %13 = vsyncpa [#allocation4], 0
    %14 = vsyncpa [#allocation9], 0
    // Predicated region
    $region2: #{tpu_custom_call.1} parent=1 // pred_check
      _
    $region3: #{tpu_custom_call.1} parent=1 // pred_check_branch
      %16 = sbr.rel (0) target = $region5
    $region4: #{tpu_custom_call.1} parent=1 // pred_region
      %s18 = ssub.s32 4096, 4096
      %19 = vsyncadd [#allocation3], %s18
      %s20 = sshll.u32 [#allocation2], 4
      %s21 = int_to_ptr.vmem [resolvable:$true] %s20
      %26 = dma.hbm_to_vmem [thread:$0]  %s0, 4096, %s21, [#allocation3], 128, 128, 8
    $region5: #{tpu_custom_call.1} parent=1 // pred_fallthru
      _
    // Predicated region
    $region6: #{tpu_custom_call.1} parent=1 // pred_check
      _
    $region7: #{tpu_custom_call.1} parent=1 // pred_check_branch
      %28 = sbr.rel (0) target = $region9
    $region8: #{tpu_custom_call.1} parent=1 // pred_region
      _
    $region9: #{tpu_custom_call.1} parent=1 // pred_fallthru
      _
    // Predicated region
    $region10: #{tpu_custom_call.1} parent=1 // pred_check
      _
    $region11: #{tpu_custom_call.1} parent=1 // pred_check_branch
      %30 = sbr.rel (0) target = $region13
    $region12: #{tpu_custom_call.1} parent=1 // pred_region
      %s32 = ssub.s32 3072, 3072
      %33 = vsyncadd [#allocation6], %s32
      %s34 = sshll.u32 [#allocation5], 4
      %s35 = int_to_ptr.vmem [resolvable:$true] %s34
      %40 = dma.hbm_to_vmem [thread:$0]  %s2, 3072, %s35, [#allocation6], 192, 192, 12
    $region13: #{tpu_custom_call.1} parent=1 // pred_fallthru
      _
    // Predicated region
    $region14: #{tpu_custom_call.1} parent=1 // pred_check
      _
    $region15: #{tpu_custom_call.1} parent=1 // pred_check_branch
      %42 = sbr.rel (0) target = $region17
    $region16: #{tpu_custom_call.1} parent=1 // pred_region
      %43 = dma.done [#allocation3], 4096
    $region17: #{tpu_custom_call.1} parent=1 // pred_fallthru
      _
    // Predicated region
    $region18: #{tpu_custom_call.1} parent=1 // pred_check
      _
    $region19: #{tpu_custom_call.1} parent=1 // pred_check_branch
      %45 = sbr.rel (0) target = $region21
    $region20: #{tpu_custom_call.1} parent=1 // pred_region
      %46 = dma.done [#allocation6], 3072
    $region21: #{tpu_custom_call.1} parent=1 // pred_fallthru
      _
    %v48 = vld [vmem:[#allocation2] sm:$0xff]
    %v49 = vld [vmem:[#allocation2 + $0x8] sm:$0xff]
    %v50 = vld [vmem:[#allocation2 + $0x10] sm:$0xff]
    %v51 = vld [vmem:[#allocation2 + $0x18] sm:$0xff]
    %v52 = vld [vmem:[#allocation2 + $0x20] sm:$0xff]
    %v53 = vld [vmem:[#allocation2 + $0x28] sm:$0xff]
    %v54 = vld [vmem:[#allocation2 + $0x30] sm:$0xff]
    %v55 = vld [vmem:[#allocation2 + $0x38] sm:$0xff]
    %v56 = vld [vmem:[#allocation2 + $0x40] sm:$0xff]
    %v57 = vld [vmem:[#allocation2 + $0x48] sm:$0xff]
    %v58 = vld [vmem:[#allocation2 + $0x50] sm:$0xff]
    %v59 = vld [vmem:[#allocation2 + $0x58] sm:$0xff]
    %v60 = vld [vmem:[#allocation2 + $0x60] sm:$0xff]
    %v61 = vld [vmem:[#allocation2 + $0x68] sm:$0xff]
    %v62 = vld [vmem:[#allocation2 + $0x70] sm:$0xff]
    %v63 = vld [vmem:[#allocation2 + $0x78] sm:$0xff]
    %v64 = vld [vmem:[#allocation2 + $0x80] sm:$0xff]
    %v65 = vld [vmem:[#allocation2 + $0x88] sm:$0xff]
    %v66 = vld [vmem:[#allocation2 + $0x90] sm:$0xff]
    %v67 = vld [vmem:[#allocation2 + $0x98] sm:$0xff]
    %v68 = vld [vmem:[#allocation2 + $0xa0] sm:$0xff]
    %v69 = vld [vmem:[#allocation2 + $0xa8] sm:$0xff]
    %v70 = vld [vmem:[#allocation2 + $0xb0] sm:$0xff]
    %v71 = vld [vmem:[#allocation2 + $0xb8] sm:$0xff]
    %v72 = vld [vmem:[#allocation2 + $0xc0] sm:$0xff]
    %v73 = vld [vmem:[#allocation2 + $0xc8] sm:$0xff]
    %v74 = vld [vmem:[#allocation2 + $0xd0] sm:$0xff]
    %v75 = vld [vmem:[#allocation2 + $0xd8] sm:$0xff]
    %v76 = vld [vmem:[#allocation2 + $0xe0] sm:$0xff]
    %v77 = vld [vmem:[#allocation2 + $0xe8] sm:$0xff]
    %v78 = vld [vmem:[#allocation2 + $0xf0] sm:$0xff]
    %v79 = vld [vmem:[#allocation2 + $0xf8] sm:$0xff]
    %v80 = vmul.f32 %v48, %v48
    %v81 = vmul.f32 %v49, %v49
    %v82 = vmul.f32 %v50, %v50
    %v83 = vmul.f32 %v51, %v51
    %v84 = vmul.f32 %v52, %v52
    %v85 = vmul.f32 %v53, %v53
    %v86 = vmul.f32 %v54, %v54
    %v87 = vmul.f32 %v55, %v55
    %v88 = vmul.f32 %v56, %v56
    %v89 = vmul.f32 %v57, %v57
    %v90 = vmul.f32 %v58, %v58
    %v91 = vmul.f32 %v59, %v59
    %v92 = vmul.f32 %v60, %v60
    %v93 = vmul.f32 %v61, %v61
    %v94 = vmul.f32 %v62, %v62
    %v95 = vmul.f32 %v63, %v63
    %v96 = vmul.f32 %v64, %v64
    %v97 = vmul.f32 %v65, %v65
    %v98 = vmul.f32 %v66, %v66
    %v99 = vmul.f32 %v67, %v67
    %v100 = vmul.f32 %v68, %v68
    %v101 = vmul.f32 %v69, %v69
    %v102 = vmul.f32 %v70, %v70
    %v103 = vmul.f32 %v71, %v71
    %v104 = vmul.f32 %v72, %v72
    %v105 = vmul.f32 %v73, %v73
    %v106 = vmul.f32 %v74, %v74
    %v107 = vmul.f32 %v75, %v75
    %v108 = vmul.f32 %v76, %v76
    %v109 = vmul.f32 %v77, %v77
    %v110 = vmul.f32 %v78, %v78
    %v111 = vmul.f32 %v79, %v79
    %112 = vadd.xlane.f32.xlu0 %v80
    %v113 = vpop.xlane.xlu0 %112
    %114 = vadd.xlane.f32.xlu0 %v81
    %v115 = vpop.xlane.xlu0 %114
    %116 = vadd.xlane.f32.xlu0 %v82
    %v117 = vpop.xlane.xlu0 %116
    %118 = vadd.xlane.f32.xlu0 %v83
    %v119 = vpop.xlane.xlu0 %118
    %120 = vadd.xlane.f32.xlu0 %v84
    %v121 = vpop.xlane.xlu0 %120
    %122 = vadd.xlane.f32.xlu0 %v85
    %v123 = vpop.xlane.xlu0 %122
    %124 = vadd.xlane.f32.xlu0 %v86
    %v125 = vpop.xlane.xlu0 %124
    %126 = vadd.xlane.f32.xlu0 %v87
    %v127 = vpop.xlane.xlu0 %126
    %128 = vadd.xlane.f32.xlu0 %v88
    %v129 = vpop.xlane.xlu0 %128
    %130 = vadd.xlane.f32.xlu0 %v89
    %v131 = vpop.xlane.xlu0 %130
    %132 = vadd.xlane.f32.xlu0 %v90
    %v133 = vpop.xlane.xlu0 %132
    %134 = vadd.xlane.f32.xlu0 %v91
    %v135 = vpop.xlane.xlu0 %134
    %136 = vadd.xlane.f32.xlu0 %v92
    %v137 = vpop.xlane.xlu0 %136
    %138 = vadd.xlane.f32.xlu0 %v93
    %v139 = vpop.xlane.xlu0 %138
    %140 = vadd.xlane.f32.xlu0 %v94
    %v141 = vpop.xlane.xlu0 %140
    %142 = vadd.xlane.f32.xlu0 %v95
    %v143 = vpop.xlane.xlu0 %142
    %144 = vadd.xlane.f32.xlu0 %v96
    %v145 = vpop.xlane.xlu0 %144
    %146 = vadd.xlane.f32.xlu0 %v97
    %v147 = vpop.xlane.xlu0 %146
    %148 = vadd.xlane.f32.xlu0 %v98
    %v149 = vpop.xlane.xlu0 %148
    %150 = vadd.xlane.f32.xlu0 %v99
    %v151 = vpop.xlane.xlu0 %150
    %152 = vadd.xlane.f32.xlu0 %v100
    %v153 = vpop.xlane.xlu0 %152
    %154 = vadd.xlane.f32.xlu0 %v101
    %v155 = vpop.xlane.xlu0 %154
    %156 = vadd.xlane.f32.xlu0 %v102
    %v157 = vpop.xlane.xlu0 %156
    %158 = vadd.xlane.f32.xlu0 %v103
    %v159 = vpop.xlane.xlu0 %158
    %160 = vadd.xlane.f32.xlu0 %v104
    %v161 = vpop.xlane.xlu0 %160
    %162 = vadd.xlane.f32.xlu0 %v105
    %v163 = vpop.xlane.xlu0 %162
    %164 = vadd.xlane.f32.xlu0 %v106
    %v165 = vpop.xlane.xlu0 %164
    %166 = vadd.xlane.f32.xlu0 %v107
    %v167 = vpop.xlane.xlu0 %166
    %168 = vadd.xlane.f32.xlu0 %v108
    %v169 = vpop.xlane.xlu0 %168
    %170 = vadd.xlane.f32.xlu0 %v109
    %v171 = vpop.xlane.xlu0 %170
    %172 = vadd.xlane.f32.xlu0 %v110
    %v173 = vpop.xlane.xlu0 %172
    %174 = vadd.xlane.f32.xlu0 %v111
    %v175 = vpop.xlane.xlu0 %174
    %v176 = vrcp.pop 128.0
    %v177 = vmul.f32 %v113, %v176
    %v178 = vmul.f32 %v115, %v176
    %v179 = vmul.f32 %v117, %v176
    %v180 = vmul.f32 %v119, %v176
    %v181 = vmul.f32 %v121, %v176
    %v182 = vmul.f32 %v123, %v176
    %v183 = vmul.f32 %v125, %v176
    %v184 = vmul.f32 %v127, %v176
    %v185 = vmul.f32 %v129, %v176
    %v186 = vmul.f32 %v131, %v176
    %v187 = vmul.f32 %v133, %v176
    %v188 = vmul.f32 %v135, %v176
    %v189 = vmul.f32 %v137, %v176
    %v190 = vmul.f32 %v139, %v176
    %v191 = vmul.f32 %v141, %v176
    %v192 = vmul.f32 %v143, %v176
    %v193 = vmul.f32 %v145, %v176
    %v194 = vmul.f32 %v147, %v176
    %v195 = vmul.f32 %v149, %v176
    %v196 = vmul.f32 %v151, %v176
    %v197 = vmul.f32 %v153, %v176
    %v198 = vmul.f32 %v155, %v176
    %v199 = vmul.f32 %v157, %v176
    %v200 = vmul.f32 %v159, %v176
    %v201 = vmul.f32 %v161, %v176
    %v202 = vmul.f32 %v163, %v176
    %v203 = vmul.f32 %v165, %v176
    %v204 = vmul.f32 %v167, %v176
    %v205 = vmul.f32 %v169, %v176
    %v206 = vmul.f32 %v171, %v176
    %v207 = vmul.f32 %v173, %v176
    %v208 = vmul.f32 %v175, %v176
    %v209 = vadd.f32 %v177, 1e-06
    %v210 = vadd.f32 %v178, 1e-06
    %v211 = vadd.f32 %v179, 1e-06
    %v212 = vadd.f32 %v180, 1e-06
    %v213 = vadd.f32 %v181, 1e-06
    %v214 = vadd.f32 %v182, 1e-06
    %v215 = vadd.f32 %v183, 1e-06
    %v216 = vadd.f32 %v184, 1e-06
    %v217 = vadd.f32 %v185, 1e-06
    %v218 = vadd.f32 %v186, 1e-06
    %v219 = vadd.f32 %v187, 1e-06
    %v220 = vadd.f32 %v188, 1e-06
    %v221 = vadd.f32 %v189, 1e-06
    %v222 = vadd.f32 %v190, 1e-06
    %v223 = vadd.f32 %v191, 1e-06
    %v224 = vadd.f32 %v192, 1e-06
    %v225 = vadd.f32 %v193, 1e-06
    %v226 = vadd.f32 %v194, 1e-06
    %v227 = vadd.f32 %v195, 1e-06
    %v228 = vadd.f32 %v196, 1e-06
    %v229 = vadd.f32 %v197, 1e-06
    %v230 = vadd.f32 %v198, 1e-06
    %v231 = vadd.f32 %v199, 1e-06
    %v232 = vadd.f32 %v200, 1e-06
    %v233 = vadd.f32 %v201, 1e-06
    %v234 = vadd.f32 %v202, 1e-06
    %v235 = vadd.f32 %v203, 1e-06
    %v236 = vadd.f32 %v204, 1e-06
    %v237 = vadd.f32 %v205, 1e-06
    %v238 = vadd.f32 %v206, 1e-06
    %v239 = vadd.f32 %v207, 1e-06
    %v240 = vadd.f32 %v208, 1e-06
    %v241 = vrsqrt.pop %v209
    %v242 = vrsqrt.pop %v210
    %v243 = vrsqrt.pop %v211
    %v244 = vrsqrt.pop %v212
    %v245 = vrsqrt.pop %v213
    %v246 = vrsqrt.pop %v214
    %v247 = vrsqrt.pop %v215
    %v248 = vrsqrt.pop %v216
    %v249 = vrsqrt.pop %v217
    %v250 = vrsqrt.pop %v218
    %v251 = vrsqrt.pop %v219
    %v252 = vrsqrt.pop %v220
    %v253 = vrsqrt.pop %v221
    %v254 = vrsqrt.pop %v222
    %v255 = vrsqrt.pop %v223
    %v256 = vrsqrt.pop %v224
    %v257 = vrsqrt.pop %v225
    %v258 = vrsqrt.pop %v226
    %v259 = vrsqrt.pop %v227
    %v260 = vrsqrt.pop %v228
    %v261 = vrsqrt.pop %v229
    %v262 = vrsqrt.pop %v230
    %v263 = vrsqrt.pop %v231
    %v264 = vrsqrt.pop %v232
    %v265 = vrsqrt.pop %v233
    %v266 = vrsqrt.pop %v234
    %v267 = vrsqrt.pop %v235
    %v268 = vrsqrt.pop %v236
    %v269 = vrsqrt.pop %v237
    %v270 = vrsqrt.pop %v238
    %v271 = vrsqrt.pop %v239
    %v272 = vrsqrt.pop %v240
    %v273 = vmul.f32 %v48, %v241
    %v274 = vmul.f32 %v49, %v242
    %v275 = vmul.f32 %v50, %v243
    %v276 = vmul.f32 %v51, %v244
    %v277 = vmul.f32 %v52, %v245
    %v278 = vmul.f32 %v53, %v246
    %v279 = vmul.f32 %v54, %v247
    %v280 = vmul.f32 %v55, %v248
    %v281 = vmul.f32 %v56, %v249
    %v282 = vmul.f32 %v57, %v250
    %v283 = vmul.f32 %v58, %v251
    %v284 = vmul.f32 %v59, %v252
    %v285 = vmul.f32 %v60, %v253
    %v286 = vmul.f32 %v61, %v254
    %v287 = vmul.f32 %v62, %v255
    %v288 = vmul.f32 %v63, %v256
    %v289 = vmul.f32 %v64, %v257
    %v290 = vmul.f32 %v65, %v258
    %v291 = vmul.f32 %v66, %v259
    %v292 = vmul.f32 %v67, %v260
    %v293 = vmul.f32 %v68, %v261
    %v294 = vmul.f32 %v69, %v262
    %v295 = vmul.f32 %v70, %v263
    %v296 = vmul.f32 %v71, %v264
    %v297 = vmul.f32 %v72, %v265
    %v298 = vmul.f32 %v73, %v266
    %v299 = vmul.f32 %v74, %v267
    %v300 = vmul.f32 %v75, %v268
    %v301 = vmul.f32 %v76, %v269
    %v302 = vmul.f32 %v77, %v270
    %v303 = vmul.f32 %v78, %v271
    %v304 = vmul.f32 %v79, %v272
    %v305 = vld [vmem:[%s1] sm:$0x1]
    %v307 = vlaneseq
    %v308 = vshrl.u32 %v307, 7
    %v309 = vsub.s32 0, %v308
    %v310 = vrot.slane %v305, %v309
    %v312 = vmul.f32 %v273, %v310
    %v313 = vmul.f32 %v274, %v310
    %v314 = vmul.f32 %v275, %v310
    %v315 = vmul.f32 %v276, %v310
    %v316 = vmul.f32 %v277, %v310
    %v317 = vmul.f32 %v278, %v310
    %v318 = vmul.f32 %v279, %v310
    %v319 = vmul.f32 %v280, %v310
    %v320 = vmul.f32 %v281, %v310
    %v321 = vmul.f32 %v282, %v310
    %v322 = vmul.f32 %v283, %v310
    %v323 = vmul.f32 %v284, %v310
    %v324 = vmul.f32 %v285, %v310
    %v325 = vmul.f32 %v286, %v310
    %v326 = vmul.f32 %v287, %v310
    %v327 = vmul.f32 %v288, %v310
    %v328 = vmul.f32 %v289, %v310
    %v329 = vmul.f32 %v290, %v310
    %v330 = vmul.f32 %v291, %v310
    %v331 = vmul.f32 %v292, %v310
    %v332 = vmul.f32 %v293, %v310
    %v333 = vmul.f32 %v294, %v310
    %v334 = vmul.f32 %v295, %v310
    %v335 = vmul.f32 %v296, %v310
    %v336 = vmul.f32 %v297, %v310
    %v337 = vmul.f32 %v298, %v310
    %v338 = vmul.f32 %v299, %v310
    %v339 = vmul.f32 %v300, %v310
    %v340 = vmul.f32 %v301, %v310
    %v341 = vmul.f32 %v302, %v310
    %v342 = vmul.f32 %v303, %v310
    %v343 = vmul.f32 %v304, %v310
    %v344 = vpack.c.bf16 %v313, %v312
    %v345 = vpack.c.bf16 %v315, %v314
    %v346 = vpack.c.bf16 %v317, %v316
    %v347 = vpack.c.bf16 %v319, %v318
    %v348 = vpack.c.bf16 %v321, %v320
    %v349 = vpack.c.bf16 %v323, %v322
    %v350 = vpack.c.bf16 %v325, %v324
    %v351 = vpack.c.bf16 %v327, %v326
    %v352 = vpack.c.bf16 %v329, %v328
    %v353 = vpack.c.bf16 %v331, %v330
    %v354 = vpack.c.bf16 %v333, %v332
    %v355 = vpack.c.bf16 %v335, %v334
    %v356 = vpack.c.bf16 %v337, %v336
    %v357 = vpack.c.bf16 %v339, %v338
    %v358 = vpack.c.bf16 %v341, %v340
    %v359 = vpack.c.bf16 %v343, %v342
    %v360 = vld [vmem:[#allocation5] sm:$0xff]
    %v361 = vld [vmem:[#allocation5 + $0x8] sm:$0xf]
    %v362 = vld [vmem:[#allocation5 + $0xc] sm:$0xff]
    %v363 = vld [vmem:[#allocation5 + $0x14] sm:$0xf]
    %v364 = vld [vmem:[#allocation5 + $0x18] sm:$0xff]
    %v365 = vld [vmem:[#allocation5 + $0x20] sm:$0xf]
    %v366 = vld [vmem:[#allocation5 + $0x24] sm:$0xff]
    %v367 = vld [vmem:[#allocation5 + $0x2c] sm:$0xf]
    %v368 = vld [vmem:[#allocation5 + $0x30] sm:$0xff]
    %v369 = vld [vmem:[#allocation5 + $0x38] sm:$0xf]
    %v370 = vld [vmem:[#allocation5 + $0x3c] sm:$0xff]
    %v371 = vld [vmem:[#allocation5 + $0x44] sm:$0xf]
    %v372 = vld [vmem:[#allocation5 + $0x48] sm:$0xff]
    %v373 = vld [vmem:[#allocation5 + $0x50] sm:$0xf]
    %v374 = vld [vmem:[#allocation5 + $0x54] sm:$0xff]
    %v375 = vld [vmem:[#allocation5 + $0x5c] sm:$0xf]
    %v376 = vld [vmem:[#allocation5 + $0x60] sm:$0xff]
    %v377 = vld [vmem:[#allocation5 + $0x68] sm:$0xf]
    %v378 = vld [vmem:[#allocation5 + $0x6c] sm:$0xff]
    %v379 = vld [vmem:[#allocation5 + $0x74] sm:$0xf]
    %v380 = vld [vmem:[#allocation5 + $0x78] sm:$0xff]
    %v381 = vld [vmem:[#allocation5 + $0x80] sm:$0xf]
    %v382 = vld [vmem:[#allocation5 + $0x84] sm:$0xff]
    %v383 = vld [vmem:[#allocation5 + $0x8c] sm:$0xf]
    %v384 = vld [vmem:[#allocation5 + $0x90] sm:$0xff]
    %v385 = vld [vmem:[#allocation5 + $0x98] sm:$0xf]
    %v386 = vld [vmem:[#allocation5 + $0x9c] sm:$0xff]
    %v387 = vld [vmem:[#allocation5 + $0xa4] sm:$0xf]
    %v388 = vld [vmem:[#allocation5 + $0xa8] sm:$0xff]
    %v389 = vld [vmem:[#allocation5 + $0xb0] sm:$0xf]
    %v390 = vld [vmem:[#allocation5 + $0xb4] sm:$0xff]
    %v391 = vld [vmem:[#allocation5 + $0xbc] sm:$0xf]
    %v424 = vunpack.c.l.b16 %v360
    %v425 = vunpack.c.h.b16 %v360
    %v426 = vunpack.c.l.b16 %v361
    %v427 = vunpack.c.l.b16 %v362
    %v428 = vunpack.c.h.b16 %v362
    %v429 = vunpack.c.l.b16 %v363
    %v430 = vunpack.c.l.b16 %v364
    %v431 = vunpack.c.h.b16 %v364
    %v432 = vunpack.c.l.b16 %v365
    %v433 = vunpack.c.l.b16 %v366
    %v434 = vunpack.c.h.b16 %v366
    %v435 = vunpack.c.l.b16 %v367
    %v436 = vunpack.c.l.b16 %v368
    %v437 = vunpack.c.h.b16 %v368
    %v438 = vunpack.c.l.b16 %v369
    %v439 = vunpack.c.l.b16 %v370
    %v440 = vunpack.c.h.b16 %v370
    %v441 = vunpack.c.l.b16 %v371
    %v442 = vunpack.c.l.b16 %v372
    %v443 = vunpack.c.h.b16 %v372
    %v444 = vunpack.c.l.b16 %v373
    %v445 = vunpack.c.l.b16 %v374
    %v446 = vunpack.c.h.b16 %v374
    %v447 = vunpack.c.l.b16 %v375
    %v448 = vunpack.c.l.b16 %v376
    %v449 = vunpack.c.h.b16 %v376
    %v450 = vunpack.c.l.b16 %v377
    %v451 = vunpack.c.l.b16 %v378
    %v452 = vunpack.c.h.b16 %v378
    %v453 = vunpack.c.l.b16 %v379
    %v454 = vunpack.c.l.b16 %v380
    %v455 = vunpack.c.h.b16 %v380
    %v456 = vunpack.c.l.b16 %v381
    %v457 = vunpack.c.l.b16 %v382
    %v458 = vunpack.c.h.b16 %v382
    %v459 = vunpack.c.l.b16 %v383
    %v460 = vunpack.c.l.b16 %v384
    %v461 = vunpack.c.h.b16 %v384
    %v462 = vunpack.c.l.b16 %v385
    %v463 = vunpack.c.l.b16 %v386
    %v464 = vunpack.c.h.b16 %v386
    %v465 = vunpack.c.l.b16 %v387
    %v466 = vunpack.c.l.b16 %v388
    %v467 = vunpack.c.h.b16 %v388
    %v468 = vunpack.c.l.b16 %v389
    %v469 = vunpack.c.l.b16 %v390
    %v470 = vunpack.c.h.b16 %v390
    %v471 = vunpack.c.l.b16 %v391
    %v472 = vpack.c.b16 %v427, %v424
    %v473 = vpack.c.b16 %v428, %v425
    %v474 = vpack.c.b16 %v429, %v426
    %v475 = vpack.c.b16 %v433, %v430
    %v476 = vpack.c.b16 %v434, %v431
    %v477 = vpack.c.b16 %v435, %v432
    %v478 = vpack.c.b16 %v439, %v436
    %v479 = vpack.c.b16 %v440, %v437
    %v480 = vpack.c.b16 %v441, %v438
    %v481 = vpack.c.b16 %v445, %v442
    %v482 = vpack.c.b16 %v446, %v443
    %v483 = vpack.c.b16 %v447, %v444
    %v484 = vpack.c.b16 %v451, %v448
    %v485 = vpack.c.b16 %v452, %v449
    %v486 = vpack.c.b16 %v453, %v450
    %v487 = vpack.c.b16 %v457, %v454
    %v488 = vpack.c.b16 %v458, %v455
    %v489 = vpack.c.b16 %v459, %v456
    %v490 = vpack.c.b16 %v463, %v460
    %v491 = vpack.c.b16 %v464, %v461
    %v492 = vpack.c.b16 %v465, %v462
    %v493 = vpack.c.b16 %v469, %v466
    %v494 = vpack.c.b16 %v470, %v467
    %v495 = vpack.c.b16 %v471, %v468
    %520 = vmatprep.subr.bf16.mxu0 %v473
    %521 = vmatpush1.bf16.msra.mxu0 %v472
    %522 = vmatprep.subr.bf16.mxu0 %v476
    %523 = vmatpush1.bf16.msra.mxu0 %v475
    %524 = vmatprep.subr.bf16.mxu0 %v479
    %525 = vmatpush1.bf16.msra.mxu0 %v478
    %526 = vmatprep.subr.bf16.mxu0 %v482
    %527 = vmatpush1.bf16.msra.mxu0 %v481
    %528 = vmatprep.subr.bf16.mxu0 %v485
    %529 = vmatpush1.bf16.msra.mxu0 %v484
    %530 = vmatprep.subr.bf16.mxu0 %v488
    %531 = vmatpush1.bf16.msra.mxu0 %v487
    %532 = vmatprep.subr.bf16.mxu0 %v491
    %533 = vmatpush1.bf16.msra.mxu0 %v490
    %534 = vmatprep.subr.bf16.mxu0 %v494
    %535 = vmatpush1.bf16.msra.mxu0 %v493
    %536 = vmatprep.subr.bf16.mxu0 0
    %537 = vmatpush1.bf16.msra.mxu0 0
    %538 = vmatprep.subr.bf16.mxu0 0
    %539 = vmatpush1.bf16.msra.mxu0 0
    %540 = vmatprep.subr.bf16.mxu0 0
    %541 = vmatpush1.bf16.msra.mxu0 0
    %542 = vmatprep.subr.bf16.mxu0 0
    %543 = vmatpush1.bf16.msra.mxu0 0
    %544 = vmatprep.subr.bf16.mxu0 0
    %545 = vmatpush1.bf16.msra.mxu0 0
    %546 = vmatprep.subr.bf16.mxu0 0
    %547 = vmatpush1.bf16.msra.mxu0 0
    %548 = vmatprep.subr.bf16.mxu0 0
    %549 = vmatpush1.bf16.msra.mxu0 0
    %550 = vmatprep.subr.bf16.mxu0 0
    %551 = vmatpush1.bf16.msra.mxu0 0
    %552 = vmatprep.mubr.bf16.mxu0 0
    %553 = vmatmul.mubr.bf16.gmra.mrb[0].mxu0 %v344
    %v554 = vpop.f32.mrb[0].mxu0
    %v555 = vadd.f32 0.0, %v554
    %v556 = vpop.f32.mrb[0].mxu0
    %v557 = vadd.f32 0.0, %v556
    %v558 = vpop.f32.mrb[0].mxu0
    %v559 = vadd.f32 0.0, %v558
    %v560 = vpop.f32.mrb[0].mxu0
    %v561 = vadd.f32 0.0, %v560
    %562 = vmatprep.mubr.bf16.mxu0 0
    %563 = vmatmul.mubr.bf16.gmra.mrb[0].mxu0 %v345
    %v564 = vpop.f32.mrb[0].mxu0
    %v565 = vadd.f32 0.0, %v564
    %v566 = vpop.f32.mrb[0].mxu0
    %v567 = vadd.f32 0.0, %v566
    %v568 = vpop.f32.mrb[0].mxu0
    %v569 = vadd.f32 0.0, %v568
    %v570 = vpop.f32.mrb[0].mxu0
    %v571 = vadd.f32 0.0, %v570
    %572 = vmatprep.mubr.bf16.mxu0 0
    %573 = vmatmul.mubr.bf16.gmra.mrb[0].mxu0 %v346
    %v574 = vpop.f32.mrb[0].mxu0
    %v575 = vadd.f32 0.0, %v574
    %v576 = vpop.f32.mrb[0].mxu0
    %v577 = vadd.f32 0.0, %v576
    %v578 = vpop.f32.mrb[0].mxu0
    %v579 = vadd.f32 0.0, %v578
    %v580 = vpop.f32.mrb[0].mxu0
    %v581 = vadd.f32 0.0, %v580
    %582 = vmatprep.mubr.bf16.mxu0 0
    %583 = vmatmul.mubr.bf16.gmra.mrb[0].mxu0 %v347
    %v584 = vpop.f32.mrb[0].mxu0
    %v585 = vadd.f32 0.0, %v584
    %v586 = vpop.f32.mrb[0].mxu0
    %v587 = vadd.f32 0.0, %v586
    %v588 = vpop.f32.mrb[0].mxu0
    %v589 = vadd.f32 0.0, %v588
    %v590 = vpop.f32.mrb[0].mxu0
    %v591 = vadd.f32 0.0, %v590
    %592 = vmatprep.mubr.bf16.mxu0 0
    %593 = vmatmul.mubr.bf16.gmra.mrb[0].mxu0 %v348
    %v594 = vpop.f32.mrb[0].mxu0
    %v595 = vadd.f32 0.0, %v594
    %v596 = vpop.f32.mrb[0].mxu0
    %v597 = vadd.f32 0.0, %v596
    %v598 = vpop.f32.mrb[0].mxu0
    %v599 = vadd.f32 0.0, %v598
    %v600 = vpop.f32.mrb[0].mxu0
    %v601 = vadd.f32 0.0, %v600
    %602 = vmatprep.mubr.bf16.mxu0 0
    %603 = vmatmul.mubr.bf16.gmra.mrb[0].mxu0 %v349
    %v604 = vpop.f32.mrb[0].mxu0
    %v605 = vadd.f32 0.0, %v604
    %v606 = vpop.f32.mrb[0].mxu0
    %v607 = vadd.f32 0.0, %v606
    %v608 = vpop.f32.mrb[0].mxu0
    %v609 = vadd.f32 0.0, %v608
    %v610 = vpop.f32.mrb[0].mxu0
    %v611 = vadd.f32 0.0, %v610
    %612 = vmatprep.mubr.bf16.mxu0 0
    %613 = vmatmul.mubr.bf16.gmra.mrb[0].mxu0 %v350
    %v614 = vpop.f32.mrb[0].mxu0
    %v615 = vadd.f32 0.0, %v614
    %v616 = vpop.f32.mrb[0].mxu0
    %v617 = vadd.f32 0.0, %v616
    %v618 = vpop.f32.mrb[0].mxu0
    %v619 = vadd.f32 0.0, %v618
    %v620 = vpop.f32.mrb[0].mxu0
    %v621 = vadd.f32 0.0, %v620
    %622 = vmatprep.mubr.bf16.mxu0 0
    %623 = vmatmul.mubr.bf16.gmra.mrb[0].mxu0 %v351
    %v624 = vpop.f32.mrb[0].mxu0
    %v625 = vadd.f32 0.0, %v624
    %v626 = vpop.f32.mrb[0].mxu0
    %v627 = vadd.f32 0.0, %v626
    %v628 = vpop.f32.mrb[0].mxu0
    %v629 = vadd.f32 0.0, %v628
    %v630 = vpop.f32.mrb[0].mxu0
    %v631 = vadd.f32 0.0, %v630
    %632 = vmatprep.mubr.bf16.mxu0 0
    %633 = vmatmul.mubr.bf16.gmra.mrb[0].mxu0 %v352
    %v634 = vpop.f32.mrb[0].mxu0
    %v635 = vadd.f32 0.0, %v634
    %v636 = vpop.f32.mrb[0].mxu0
    %v637 = vadd.f32 0.0, %v636
    %v638 = vpop.f32.mrb[0].mxu0
    %v639 = vadd.f32 0.0, %v638
    %v640 = vpop.f32.mrb[0].mxu0
    %v641 = vadd.f32 0.0, %v640
    %642 = vmatprep.mubr.bf16.mxu0 0
    %643 = vmatmul.mubr.bf16.gmra.mrb[0].mxu0 %v353
    %v644 = vpop.f32.mrb[0].mxu0
    %v645 = vadd.f32 0.0, %v644
    %v646 = vpop.f32.mrb[0].mxu0
    %v647 = vadd.f32 0.0, %v646
    %v648 = vpop.f32.mrb[0].mxu0
    %v649 = vadd.f32 0.0, %v648
    %v650 = vpop.f32.mrb[0].mxu0
    %v651 = vadd.f32 0.0, %v650
    %652 = vmatprep.mubr.bf16.mxu0 0
    %653 = vmatmul.mubr.bf16.gmra.mrb[0].mxu0 %v354
    %v654 = vpop.f32.mrb[0].mxu0
    %v655 = vadd.f32 0.0, %v654
    %v656 = vpop.f32.mrb[0].mxu0
    %v657 = vadd.f32 0.0, %v656
    %v658 = vpop.f32.mrb[0].mxu0
    %v659 = vadd.f32 0.0, %v658
    %v660 = vpop.f32.mrb[0].mxu0
    %v661 = vadd.f32 0.0, %v660
    %662 = vmatprep.mubr.bf16.mxu0 0
    %663 = vmatmul.mubr.bf16.gmra.mrb[0].mxu0 %v355
    %v664 = vpop.f32.mrb[0].mxu0
    %v665 = vadd.f32 0.0, %v664
    %v666 = vpop.f32.mrb[0].mxu0
    %v667 = vadd.f32 0.0, %v666
    %v668 = vpop.f32.mrb[0].mxu0
    %v669 = vadd.f32 0.0, %v668
    %v670 = vpop.f32.mrb[0].mxu0
    %v671 = vadd.f32 0.0, %v670
    %672 = vmatprep.mubr.bf16.mxu0 0
    %673 = vmatmul.mubr.bf16.gmra.mrb[0].mxu0 %v356
    %v674 = vpop.f32.mrb[0].mxu0
    %v675 = vadd.f32 0.0, %v674
    %v676 = vpop.f32.mrb[0].mxu0
    %v677 = vadd.f32 0.0, %v676
    %v678 = vpop.f32.mrb[0].mxu0
    %v679 = vadd.f32 0.0, %v678
    %v680 = vpop.f32.mrb[0].mxu0
    %v681 = vadd.f32 0.0, %v680
    %682 = vmatprep.mubr.bf16.mxu0 0
    %683 = vmatmul.mubr.bf16.gmra.mrb[0].mxu0 %v357
    %v684 = vpop.f32.mrb[0].mxu0
    %v685 = vadd.f32 0.0, %v684
    %v686 = vpop.f32.mrb[0].mxu0
    %v687 = vadd.f32 0.0, %v686
    %v688 = vpop.f32.mrb[0].mxu0
    %v689 = vadd.f32 0.0, %v688
    %v690 = vpop.f32.mrb[0].mxu0
    %v691 = vadd.f32 0.0, %v690
    %692 = vmatprep.mubr.bf16.mxu0 0
    %693 = vmatmul.mubr.bf16.gmra.mrb[0].mxu0 %v358
    %v694 = vpop.f32.mrb[0].mxu0
    %v695 = vadd.f32 0.0, %v694
    %v696 = vpop.f32.mrb[0].mxu0
    %v697 = vadd.f32 0.0, %v696
    %v698 = vpop.f32.mrb[0].mxu0
    %v699 = vadd.f32 0.0, %v698
    %v700 = vpop.f32.mrb[0].mxu0
    %v701 = vadd.f32 0.0, %v700
    %702 = vmatprep.mubr.bf16.mxu0 0
    %703 = vmatmul.mubr.bf16.gmra.mrb[0].mxu0 %v359
    %v704 = vpop.f32.mrb[0].mxu0
    %v705 = vadd.f32 0.0, %v704
    %v706 = vpop.f32.mrb[0].mxu0
    %v707 = vadd.f32 0.0, %v706
    %v708 = vpop.f32.mrb[0].mxu0
    %v709 = vadd.f32 0.0, %v708
    %v710 = vpop.f32.mrb[0].mxu0
    %v711 = vadd.f32 0.0, %v710
    %712 = vdwg.mxu0
    %713 = vmatprep.subr.bf16.mxu0 0
    %714 = vmatpush1.bf16.msra.mxu0 %v474
    %715 = vmatprep.subr.bf16.mxu0 0
    %716 = vmatpush1.bf16.msra.mxu0 %v477
    %717 = vmatprep.subr.bf16.mxu0 0
    %718 = vmatpush1.bf16.msra.mxu0 %v480
    %719 = vmatprep.subr.bf16.mxu0 0
    %720 = vmatpush1.bf16.msra.mxu0 %v483
    %721 = vmatprep.subr.bf16.mxu0 0
    %722 = vmatpush1.bf16.msra.mxu0 %v486
    %723 = vmatprep.subr.bf16.mxu0 0
    %724 = vmatpush1.bf16.msra.mxu0 %v489
    %725 = vmatprep.subr.bf16.mxu0 0
    %726 = vmatpush1.bf16.msra.mxu0 %v492
    %727 = vmatprep.subr.bf16.mxu0 0
    %728 = vmatpush1.bf16.msra.mxu0 %v495
    %729 = vmatprep.subr.bf16.mxu0 0
    %730 = vmatpush1.bf16.msra.mxu0 0
    %731 = vmatprep.subr.bf16.mxu0 0
    %732 = vmatpush1.bf16.msra.mxu0 0
    %733 = vmatprep.subr.bf16.mxu0 0
    %734 = vmatpush1.bf16.msra.mxu0 0
    %735 = vmatprep.subr.bf16.mxu0 0
    %736 = vmatpush1.bf16.msra.mxu0 0
    %737 = vmatprep.subr.bf16.mxu0 0
    %738 = vmatpush1.bf16.msra.mxu0 0
    %739 = vmatprep.subr.bf16.mxu0 0
    %740 = vmatpush1.bf16.msra.mxu0 0
    %741 = vmatprep.subr.bf16.mxu0 0
    %742 = vmatpush1.bf16.msra.mxu0 0
    %743 = vmatprep.subr.bf16.mxu0 0
    %744 = vmatpush1.bf16.msra.mxu0 0
    %745 = vmatprep.mubr.bf16.mxu0 0
    %746 = vmatmul.mubr.bf16.gmra.mrb[0].mxu0 %v344
    %v747 = vpop.f32.mrb[0].mxu0
    %v748 = vadd.f32 0.0, %v747
    %v749 = vpop.f32.mrb[0].mxu0
    %v750 = vpop.f32.mrb[0].mxu0
    %v751 = vadd.f32 0.0, %v750
    %v752 = vpop.f32.mrb[0].mxu0
    %753 = vmatprep.mubr.bf16.mxu0 0
    %754 = vmatmul.mubr.bf16.gmra.mrb[0].mxu0 %v345
    %v755 = vpop.f32.mrb[0].mxu0
    %v756 = vadd.f32 0.0, %v755
    %v757 = vpop.f32.mrb[0].mxu0
    %v758 = vpop.f32.mrb[0].mxu0
    %v759 = vadd.f32 0.0, %v758
    %v760 = vpop.f32.mrb[0].mxu0
    %761 = vmatprep.mubr.bf16.mxu0 0
    %762 = vmatmul.mubr.bf16.gmra.mrb[0].mxu0 %v346
    %v763 = vpop.f32.mrb[0].mxu0
    %v764 = vadd.f32 0.0, %v763
    %v765 = vpop.f32.mrb[0].mxu0
    %v766 = vpop.f32.mrb[0].mxu0
    %v767 = vadd.f32 0.0, %v766
    %v768 = vpop.f32.mrb[0].mxu0
    %769 = vmatprep.mubr.bf16.mxu0 0
    %770 = vmatmul.mubr.bf16.gmra.mrb[0].mxu0 %v347
    %v771 = vpop.f32.mrb[0].mxu0
    %v772 = vadd.f32 0.0, %v771
    %v773 = vpop.f32.mrb[0].mxu0
    %v774 = vpop.f32.mrb[0].mxu0
    %v775 = vadd.f32 0.0, %v774
    %v776 = vpop.f32.mrb[0].mxu0
    %777 = vmatprep.mubr.bf16.mxu0 0
    %778 = vmatmul.mubr.bf16.gmra.mrb[0].mxu0 %v348
    %v779 = vpop.f32.mrb[0].mxu0
    %v780 = vadd.f32 0.0, %v779
    %v781 = vpop.f32.mrb[0].mxu0
    %v782 = vpop.f32.mrb[0].mxu0
    %v783 = vadd.f32 0.0, %v782
    %v784 = vpop.f32.mrb[0].mxu0
    %785 = vmatprep.mubr.bf16.mxu0 0
    %786 = vmatmul.mubr.bf16.gmra.mrb[0].mxu0 %v349
    %v787 = vpop.f32.mrb[0].mxu0
    %v788 = vadd.f32 0.0, %v787
    %v789 = vpop.f32.mrb[0].mxu0
    %v790 = vpop.f32.mrb[0].mxu0
    %v791 = vadd.f32 0.0, %v790
    %v792 = vpop.f32.mrb[0].mxu0
    %793 = vmatprep.mubr.bf16.mxu0 0
    %794 = vmatmul.mubr.bf16.gmra.mrb[0].mxu0 %v350
    %v795 = vpop.f32.mrb[0].mxu0
    %v796 = vadd.f32 0.0, %v795
    %v797 = vpop.f32.mrb[0].mxu0
    %v798 = vpop.f32.mrb[0].mxu0
    %v799 = vadd.f32 0.0, %v798
    %v800 = vpop.f32.mrb[0].mxu0
    %801 = vmatprep.mubr.bf16.mxu0 0
    %802 = vmatmul.mubr.bf16.gmra.mrb[0].mxu0 %v351
    %v803 = vpop.f32.mrb[0].mxu0
    %v804 = vadd.f32 0.0, %v803
    %v805 = vpop.f32.mrb[0].mxu0
    %v806 = vpop.f32.mrb[0].mxu0
    %v807 = vadd.f32 0.0, %v806
    %v808 = vpop.f32.mrb[0].mxu0
    %809 = vmatprep.mubr.bf16.mxu0 0
    %810 = vmatmul.mubr.bf16.gmra.mrb[0].mxu0 %v352
    %v811 = vpop.f32.mrb[0].mxu0
    %v812 = vadd.f32 0.0, %v811
    %v813 = vpop.f32.mrb[0].mxu0
    %v814 = vpop.f32.mrb[0].mxu0
    %v815 = vadd.f32 0.0, %v814
    %v816 = vpop.f32.mrb[0].mxu0
    %817 = vmatprep.mubr.bf16.mxu0 0
    %818 = vmatmul.mubr.bf16.gmra.mrb[0].mxu0 %v353
    %v819 = vpop.f32.mrb[0].mxu0
    %v820 = vadd.f32 0.0, %v819
    %v821 = vpop.f32.mrb[0].mxu0
    %v822 = vpop.f32.mrb[0].mxu0
    %v823 = vadd.f32 0.0, %v822
    %v824 = vpop.f32.mrb[0].mxu0
    %825 = vmatprep.mubr.bf16.mxu0 0
    %826 = vmatmul.mubr.bf16.gmra.mrb[0].mxu0 %v354
    %v827 = vpop.f32.mrb[0].mxu0
    %v828 = vadd.f32 0.0, %v827
    %v829 = vpop.f32.mrb[0].mxu0
    %v830 = vpop.f32.mrb[0].mxu0
    %v831 = vadd.f32 0.0, %v830
    %v832 = vpop.f32.mrb[0].mxu0
    %833 = vmatprep.mubr.bf16.mxu0 0
    %834 = vmatmul.mubr.bf16.gmra.mrb[0].mxu0 %v355
    %v835 = vpop.f32.mrb[0].mxu0
    %v836 = vadd.f32 0.0, %v835
    %v837 = vpop.f32.mrb[0].mxu0
    %v838 = vpop.f32.mrb[0].mxu0
    %v839 = vadd.f32 0.0, %v838
    %v840 = vpop.f32.mrb[0].mxu0
    %841 = vmatprep.mubr.bf16.mxu0 0
    %842 = vmatmul.mubr.bf16.gmra.mrb[0].mxu0 %v356
    %v843 = vpop.f32.mrb[0].mxu0
    %v844 = vadd.f32 0.0, %v843
    %v845 = vpop.f32.mrb[0].mxu0
    %v846 = vpop.f32.mrb[0].mxu0
    %v847 = vadd.f32 0.0, %v846
    %v848 = vpop.f32.mrb[0].mxu0
    %849 = vmatprep.mubr.bf16.mxu0 0
    %850 = vmatmul.mubr.bf16.gmra.mrb[0].mxu0 %v357
    %v851 = vpop.f32.mrb[0].mxu0
    %v852 = vadd.f32 0.0, %v851
    %v853 = vpop.f32.mrb[0].mxu0
    %v854 = vpop.f32.mrb[0].mxu0
    %v855 = vadd.f32 0.0, %v854
    %v856 = vpop.f32.mrb[0].mxu0
    %857 = vmatprep.mubr.bf16.mxu0 0
    %858 = vmatmul.mubr.bf16.gmra.mrb[0].mxu0 %v358
    %v859 = vpop.f32.mrb[0].mxu0
    %v860 = vadd.f32 0.0, %v859
    %v861 = vpop.f32.mrb[0].mxu0
    %v862 = vpop.f32.mrb[0].mxu0
    %v863 = vadd.f32 0.0, %v862
    %v864 = vpop.f32.mrb[0].mxu0
    %865 = vmatprep.mubr.bf16.mxu0 0
    %866 = vmatmul.mubr.bf16.gmra.mrb[0].mxu0 %v359
    %v867 = vpop.f32.mrb[0].mxu0
    %v868 = vadd.f32 0.0, %v867
    %v869 = vpop.f32.mrb[0].mxu0
    %v870 = vpop.f32.mrb[0].mxu0
    %v871 = vadd.f32 0.0, %v870
    %v872 = vpop.f32.mrb[0].mxu0
    %873 = vdwg.mxu0
    %v874 = vpack.c.bf16 %v559, %v555
    %v875 = vpack.c.bf16 %v569, %v565
    %v876 = vpack.c.bf16 %v579, %v575
    %v877 = vpack.c.bf16 %v589, %v585
    %v878 = vpack.c.bf16 %v599, %v595
    %v879 = vpack.c.bf16 %v609, %v605
    %v880 = vpack.c.bf16 %v619, %v615
    %v881 = vpack.c.bf16 %v629, %v625
    %v882 = vpack.c.bf16 %v639, %v635
    %v883 = vpack.c.bf16 %v649, %v645
    %v884 = vpack.c.bf16 %v659, %v655
    %v885 = vpack.c.bf16 %v669, %v665
    %v886 = vpack.c.bf16 %v679, %v675
    %v887 = vpack.c.bf16 %v689, %v685
    %v888 = vpack.c.bf16 %v699, %v695
    %v889 = vpack.c.bf16 %v709, %v705
    %v906 = vunpack.c.l.b16 %v874
    %v907 = vunpack.c.h.b16 %v874
    %v908 = vunpack.c.l.b16 %v875
    %v909 = vunpack.c.h.b16 %v875
    %v910 = vunpack.c.l.b16 %v876
    %v911 = vunpack.c.h.b16 %v876
    %v912 = vunpack.c.l.b16 %v877
    %v913 = vunpack.c.h.b16 %v877
    %v914 = vunpack.c.l.b16 %v878
    %v915 = vunpack.c.h.b16 %v878
    %v916 = vunpack.c.l.b16 %v879
    %v917 = vunpack.c.h.b16 %v879
    %v918 = vunpack.c.l.b16 %v880
    %v919 = vunpack.c.h.b16 %v880
    %v920 = vunpack.c.l.b16 %v881
    %v921 = vunpack.c.h.b16 %v881
    %v922 = vunpack.c.l.b16 %v882
    %v923 = vunpack.c.h.b16 %v882
    %v924 = vunpack.c.l.b16 %v883
    %v925 = vunpack.c.h.b16 %v883
    %v926 = vunpack.c.l.b16 %v884
    %v927 = vunpack.c.h.b16 %v884
    %v928 = vunpack.c.l.b16 %v885
    %v929 = vunpack.c.h.b16 %v885
    %v930 = vunpack.c.l.b16 %v886
    %v931 = vunpack.c.h.b16 %v886
    %v932 = vunpack.c.l.b16 %v887
    %v933 = vunpack.c.h.b16 %v887
    %v934 = vunpack.c.l.b16 %v888
    %v935 = vunpack.c.h.b16 %v888
    %v936 = vunpack.c.l.b16 %v889
    %v937 = vunpack.c.h.b16 %v889
    %v938 = vpack.c.b16 %v906, %v906
    %v939 = vpack.c.b16 %v907, %v907
    %v940 = vpack.c.b16 %v908, %v908
    %v941 = vpack.c.b16 %v909, %v909
    %v942 = vpack.c.b16 %v910, %v910
    %v943 = vpack.c.b16 %v911, %v911
    %v944 = vpack.c.b16 %v912, %v912
    %v945 = vpack.c.b16 %v913, %v913
    %v946 = vpack.c.b16 %v914, %v914
    %v947 = vpack.c.b16 %v915, %v915
    %v948 = vpack.c.b16 %v916, %v916
    %v949 = vpack.c.b16 %v917, %v917
    %v950 = vpack.c.b16 %v918, %v918
    %v951 = vpack.c.b16 %v919, %v919
    %v952 = vpack.c.b16 %v920, %v920
    %v953 = vpack.c.b16 %v921, %v921
    %v954 = vpack.c.b16 %v922, %v922
    %v955 = vpack.c.b16 %v923, %v923
    %v956 = vpack.c.b16 %v924, %v924
    %v957 = vpack.c.b16 %v925, %v925
    %v958 = vpack.c.b16 %v926, %v926
    %v959 = vpack.c.b16 %v927, %v927
    %v960 = vpack.c.b16 %v928, %v928
    %v961 = vpack.c.b16 %v929, %v929
    %v962 = vpack.c.b16 %v930, %v930
    %v963 = vpack.c.b16 %v931, %v931
    %v964 = vpack.c.b16 %v932, %v932
    %v965 = vpack.c.b16 %v933, %v933
    %v966 = vpack.c.b16 %v934, %v934
    %v967 = vpack.c.b16 %v935, %v935
    %v968 = vpack.c.b16 %v936, %v936
    %v969 = vpack.c.b16 %v937, %v937
    %1002 = vst [vmem:[#allocation7] sm:$0xf] %v938
    %1003 = vst [vmem:[#allocation7 + $0x4] sm:$0xf] %v939
    %1004 = vst [vmem:[#allocation7 + $0x8] sm:$0xf] %v940
    %1005 = vst [vmem:[#allocation7 + $0xc] sm:$0xf] %v941
    %1006 = vst [vmem:[#allocation7 + $0x10] sm:$0xf] %v942
    %1007 = vst [vmem:[#allocation7 + $0x14] sm:$0xf] %v943
    %1008 = vst [vmem:[#allocation7 + $0x18] sm:$0xf] %v944
    %1009 = vst [vmem:[#allocation7 + $0x1c] sm:$0xf] %v945
    %1010 = vst [vmem:[#allocation7 + $0x20] sm:$0xf] %v946
    %1011 = vst [vmem:[#allocation7 + $0x24] sm:$0xf] %v947
    %1012 = vst [vmem:[#allocation7 + $0x28] sm:$0xf] %v948
    %1013 = vst [vmem:[#allocation7 + $0x2c] sm:$0xf] %v949
    %1014 = vst [vmem:[#allocation7 + $0x30] sm:$0xf] %v950
    %1015 = vst [vmem:[#allocation7 + $0x34] sm:$0xf] %v951
    %1016 = vst [vmem:[#allocation7 + $0x38] sm:$0xf] %v952
    %1017 = vst [vmem:[#allocation7 + $0x3c] sm:$0xf] %v953
    %1018 = vst [vmem:[#allocation7 + $0x40] sm:$0xf] %v954
    %1019 = vst [vmem:[#allocation7 + $0x44] sm:$0xf] %v955
    %1020 = vst [vmem:[#allocation7 + $0x48] sm:$0xf] %v956
    %1021 = vst [vmem:[#allocation7 + $0x4c] sm:$0xf] %v957
    %1022 = vst [vmem:[#allocation7 + $0x50] sm:$0xf] %v958
    %1023 = vst [vmem:[#allocation7 + $0x54] sm:$0xf] %v959
    %1024 = vst [vmem:[#allocation7 + $0x58] sm:$0xf] %v960
    %1025 = vst [vmem:[#allocation7 + $0x5c] sm:$0xf] %v961
    %1026 = vst [vmem:[#allocation7 + $0x60] sm:$0xf] %v962
    %1027 = vst [vmem:[#allocation7 + $0x64] sm:$0xf] %v963
    %1028 = vst [vmem:[#allocation7 + $0x68] sm:$0xf] %v964
    %1029 = vst [vmem:[#allocation7 + $0x6c] sm:$0xf] %v965
    %1030 = vst [vmem:[#allocation7 + $0x70] sm:$0xf] %v966
    %1031 = vst [vmem:[#allocation7 + $0x74] sm:$0xf] %v967
    %1032 = vst [vmem:[#allocation7 + $0x78] sm:$0xf] %v968
    %1033 = vst [vmem:[#allocation7 + $0x7c] sm:$0xf] %v969
    %v1034 = vpack.c.bf16 %v561, %v557
    %v1035 = vpack.c.bf16 %v571, %v567
    %v1036 = vpack.c.bf16 %v581, %v577
    %v1037 = vpack.c.bf16 %v591, %v587
    %v1038 = vpack.c.bf16 %v601, %v597
    %v1039 = vpack.c.bf16 %v611, %v607
    %v1040 = vpack.c.bf16 %v621, %v617
    %v1041 = vpack.c.bf16 %v631, %v627
    %v1042 = vpack.c.bf16 %v641, %v637
    %v1043 = vpack.c.bf16 %v651, %v647
    %v1044 = vpack.c.bf16 %v661, %v657
    %v1045 = vpack.c.bf16 %v671, %v667
    %v1046 = vpack.c.bf16 %v681, %v677
    %v1047 = vpack.c.bf16 %v691, %v687
    %v1048 = vpack.c.bf16 %v701, %v697
    %v1049 = vpack.c.bf16 %v711, %v707
    %v1066 = vunpack.c.l.b16 %v1034
    %v1067 = vunpack.c.h.b16 %v1034
    %v1068 = vunpack.c.l.b16 %v1035
    %v1069 = vunpack.c.h.b16 %v1035
    %v1070 = vunpack.c.l.b16 %v1036
    %v1071 = vunpack.c.h.b16 %v1036
    %v1072 = vunpack.c.l.b16 %v1037
    %v1073 = vunpack.c.h.b16 %v1037
    %v1074 = vunpack.c.l.b16 %v1038
    %v1075 = vunpack.c.h.b16 %v1038
    %v1076 = vunpack.c.l.b16 %v1039
    %v1077 = vunpack.c.h.b16 %v1039
    %v1078 = vunpack.c.l.b16 %v1040
    %v1079 = vunpack.c.h.b16 %v1040
    %v1080 = vunpack.c.l.b16 %v1041
    %v1081 = vunpack.c.h.b16 %v1041
    %v1082 = vunpack.c.l.b16 %v1042
    %v1083 = vunpack.c.h.b16 %v1042
    %v1084 = vunpack.c.l.b16 %v1043
    %v1085 = vunpack.c.h.b16 %v1043
    %v1086 = vunpack.c.l.b16 %v1044
    %v1087 = vunpack.c.h.b16 %v1044
    %v1088 = vunpack.c.l.b16 %v1045
    %v1089 = vunpack.c.h.b16 %v1045
    %v1090 = vunpack.c.l.b16 %v1046
    %v1091 = vunpack.c.h.b16 %v1046
    %v1092 = vunpack.c.l.b16 %v1047
    %v1093 = vunpack.c.h.b16 %v1047
    %v1094 = vunpack.c.l.b16 %v1048
    %v1095 = vunpack.c.h.b16 %v1048
    %v1096 = vunpack.c.l.b16 %v1049
    %v1097 = vunpack.c.h.b16 %v1049
    %v1098 = vpack.c.b16 %v1066, %v1066
    %v1099 = vpack.c.b16 %v1067, %v1067
    %v1100 = vpack.c.b16 %v1068, %v1068
    %v1101 = vpack.c.b16 %v1069, %v1069
    %v1102 = vpack.c.b16 %v1070, %v1070
    %v1103 = vpack.c.b16 %v1071, %v1071
    %v1104 = vpack.c.b16 %v1072, %v1072
    %v1105 = vpack.c.b16 %v1073, %v1073
    %v1106 = vpack.c.b16 %v1074, %v1074
    %v1107 = vpack.c.b16 %v1075, %v1075
    %v1108 = vpack.c.b16 %v1076, %v1076
    %v1109 = vpack.c.b16 %v1077, %v1077
    %v1110 = vpack.c.b16 %v1078, %v1078
    %v1111 = vpack.c.b16 %v1079, %v1079
    %v1112 = vpack.c.b16 %v1080, %v1080
    %v1113 = vpack.c.b16 %v1081, %v1081
    %v1114 = vpack.c.b16 %v1082, %v1082
    %v1115 = vpack.c.b16 %v1083, %v1083
    %v1116 = vpack.c.b16 %v1084, %v1084
    %v1117 = vpack.c.b16 %v1085, %v1085
    %v1118 = vpack.c.b16 %v1086, %v1086
    %v1119 = vpack.c.b16 %v1087, %v1087
    %v1120 = vpack.c.b16 %v1088, %v1088
    %v1121 = vpack.c.b16 %v1089, %v1089
    %v1122 = vpack.c.b16 %v1090, %v1090
    %v1123 = vpack.c.b16 %v1091, %v1091
    %v1124 = vpack.c.b16 %v1092, %v1092
    %v1125 = vpack.c.b16 %v1093, %v1093
    %v1126 = vpack.c.b16 %v1094, %v1094
    %v1127 = vpack.c.b16 %v1095, %v1095
    %v1128 = vpack.c.b16 %v1096, %v1096
    %v1129 = vpack.c.b16 %v1097, %v1097
    %1162 = vst [vmem:[#allocation8] sm:$0xf] %v1098
    %1163 = vst [vmem:[#allocation8 + $0x4] sm:$0xf] %v1099
    %1164 = vst [vmem:[#allocation8 + $0x8] sm:$0xf] %v1100
    %1165 = vst [vmem:[#allocation8 + $0xc] sm:$0xf] %v1101
    %1166 = vst [vmem:[#allocation8 + $0x10] sm:$0xf] %v1102
    %1167 = vst [vmem:[#allocation8 + $0x14] sm:$0xf] %v1103
    %1168 = vst [vmem:[#allocation8 + $0x18] sm:$0xf] %v1104
    %1169 = vst [vmem:[#allocation8 + $0x1c] sm:$0xf] %v1105
    %1170 = vst [vmem:[#allocation8 + $0x20] sm:$0xf] %v1106
    %1171 = vst [vmem:[#allocation8 + $0x24] sm:$0xf] %v1107
    %1172 = vst [vmem:[#allocation8 + $0x28] sm:$0xf] %v1108
    %1173 = vst [vmem:[#allocation8 + $0x2c] sm:$0xf] %v1109
    %1174 = vst [vmem:[#allocation8 + $0x30] sm:$0xf] %v1110
    %1175 = vst [vmem:[#allocation8 + $0x34] sm:$0xf] %v1111
    %1176 = vst [vmem:[#allocation8 + $0x38] sm:$0xf] %v1112
    %1177 = vst [vmem:[#allocation8 + $0x3c] sm:$0xf] %v1113
    %1178 = vst [vmem:[#allocation8 + $0x40] sm:$0xf] %v1114
    %1179 = vst [vmem:[#allocation8 + $0x44] sm:$0xf] %v1115
    %1180 = vst [vmem:[#allocation8 + $0x48] sm:$0xf] %v1116
    %1181 = vst [vmem:[#allocation8 + $0x4c] sm:$0xf] %v1117
    %1182 = vst [vmem:[#allocation8 + $0x50] sm:$0xf] %v1118
    %1183 = vst [vmem:[#allocation8 + $0x54] sm:$0xf] %v1119
    %1184 = vst [vmem:[#allocation8 + $0x58] sm:$0xf] %v1120
    %1185 = vst [vmem:[#allocation8 + $0x5c] sm:$0xf] %v1121
    %1186 = vst [vmem:[#allocation8 + $0x60] sm:$0xf] %v1122
    %1187 = vst [vmem:[#allocation8 + $0x64] sm:$0xf] %v1123
    %1188 = vst [vmem:[#allocation8 + $0x68] sm:$0xf] %v1124
    %1189 = vst [vmem:[#allocation8 + $0x6c] sm:$0xf] %v1125
    %1190 = vst [vmem:[#allocation8 + $0x70] sm:$0xf] %v1126
    %1191 = vst [vmem:[#allocation8 + $0x74] sm:$0xf] %v1127
    %1192 = vst [vmem:[#allocation8 + $0x78] sm:$0xf] %v1128
    %1193 = vst [vmem:[#allocation8 + $0x7c] sm:$0xf] %v1129
    %v1194 = vpack.c.bf16 %v751, %v748
    %v1195 = vpack.c.bf16 %v759, %v756
    %v1196 = vpack.c.bf16 %v767, %v764
    %v1197 = vpack.c.bf16 %v775, %v772
    %v1198 = vpack.c.bf16 %v783, %v780
    %v1199 = vpack.c.bf16 %v791, %v788
    %v1200 = vpack.c.bf16 %v799, %v796
    %v1201 = vpack.c.bf16 %v807, %v804
    %v1202 = vpack.c.bf16 %v815, %v812
    %v1203 = vpack.c.bf16 %v823, %v820
    %v1204 = vpack.c.bf16 %v831, %v828
    %v1205 = vpack.c.bf16 %v839, %v836
    %v1206 = vpack.c.bf16 %v847, %v844
    %v1207 = vpack.c.bf16 %v855, %v852
    %v1208 = vpack.c.bf16 %v863, %v860
    %v1209 = vpack.c.bf16 %v871, %v868
    %v1226 = vunpack.c.l.b16 %v1194
    %v1227 = vunpack.c.h.b16 %v1194
    %v1228 = vunpack.c.l.b16 %v1195
    %v1229 = vunpack.c.h.b16 %v1195
    %v1230 = vunpack.c.l.b16 %v1196
    %v1231 = vunpack.c.h.b16 %v1196
    %v1232 = vunpack.c.l.b16 %v1197
    %v1233 = vunpack.c.h.b16 %v1197
    %v1234 = vunpack.c.l.b16 %v1198
    %v1235 = vunpack.c.h.b16 %v1198
    %v1236 = vunpack.c.l.b16 %v1199
    %v1237 = vunpack.c.h.b16 %v1199
    %v1238 = vunpack.c.l.b16 %v1200
    %v1239 = vunpack.c.h.b16 %v1200
    %v1240 = vunpack.c.l.b16 %v1201
    %v1241 = vunpack.c.h.b16 %v1201
    %v1242 = vunpack.c.l.b16 %v1202
    %v1243 = vunpack.c.h.b16 %v1202
    %v1244 = vunpack.c.l.b16 %v1203
    %v1245 = vunpack.c.h.b16 %v1203
    %v1246 = vunpack.c.l.b16 %v1204
    %v1247 = vunpack.c.h.b16 %v1204
    %v1248 = vunpack.c.l.b16 %v1205
    %v1249 = vunpack.c.h.b16 %v1205
    %v1250 = vunpack.c.l.b16 %v1206
    %v1251 = vunpack.c.h.b16 %v1206
    %v1252 = vunpack.c.l.b16 %v1207
    %v1253 = vunpack.c.h.b16 %v1207
    %v1254 = vunpack.c.l.b16 %v1208
    %v1255 = vunpack.c.h.b16 %v1208
    %v1256 = vunpack.c.l.b16 %v1209
    %v1257 = vunpack.c.h.b16 %v1209
    %v1258 = vpack.c.b16 %v1226, %v1226
    %v1259 = vpack.c.b16 %v1227, %v1227
    %v1260 = vpack.c.b16 %v1228, %v1228
    %v1261 = vpack.c.b16 %v1229, %v1229
    %v1262 = vpack.c.b16 %v1230, %v1230
    %v1263 = vpack.c.b16 %v1231, %v1231
    %v1264 = vpack.c.b16 %v1232, %v1232
    %v1265 = vpack.c.b16 %v1233, %v1233
    %v1266 = vpack.c.b16 %v1234, %v1234
    %v1267 = vpack.c.b16 %v1235, %v1235
    %v1268 = vpack.c.b16 %v1236, %v1236
    %v1269 = vpack.c.b16 %v1237, %v1237
    %v1270 = vpack.c.b16 %v1238, %v1238
    %v1271 = vpack.c.b16 %v1239, %v1239
    %v1272 = vpack.c.b16 %v1240, %v1240
    %v1273 = vpack.c.b16 %v1241, %v1241
    %v1274 = vpack.c.b16 %v1242, %v1242
    %v1275 = vpack.c.b16 %v1243, %v1243
    %v1276 = vpack.c.b16 %v1244, %v1244
    %v1277 = vpack.c.b16 %v1245, %v1245
    %v1278 = vpack.c.b16 %v1246, %v1246
    %v1279 = vpack.c.b16 %v1247, %v1247
    %v1280 = vpack.c.b16 %v1248, %v1248
    %v1281 = vpack.c.b16 %v1249, %v1249
    %v1282 = vpack.c.b16 %v1250, %v1250
    %v1283 = vpack.c.b16 %v1251, %v1251
    %v1284 = vpack.c.b16 %v1252, %v1252
    %v1285 = vpack.c.b16 %v1253, %v1253
    %v1286 = vpack.c.b16 %v1254, %v1254
    %v1287 = vpack.c.b16 %v1255, %v1255
    %v1288 = vpack.c.b16 %v1256, %v1256
    %v1289 = vpack.c.b16 %v1257, %v1257
    %1322 = vst [vmem:[#allocation10] sm:$0xf] %v1258
    %1323 = vst [vmem:[#allocation10 + $0x4] sm:$0xf] %v1259
    %1324 = vst [vmem:[#allocation10 + $0x8] sm:$0xf] %v1260
    %1325 = vst [vmem:[#allocation10 + $0xc] sm:$0xf] %v1261
    %1326 = vst [vmem:[#allocation10 + $0x10] sm:$0xf] %v1262
    %1327 = vst [vmem:[#allocation10 + $0x14] sm:$0xf] %v1263
    %1328 = vst [vmem:[#allocation10 + $0x18] sm:$0xf] %v1264
    %1329 = vst [vmem:[#allocation10 + $0x1c] sm:$0xf] %v1265
    %1330 = vst [vmem:[#allocation10 + $0x20] sm:$0xf] %v1266
    %1331 = vst [vmem:[#allocation10 + $0x24] sm:$0xf] %v1267
    %1332 = vst [vmem:[#allocation10 + $0x28] sm:$0xf] %v1268
    %1333 = vst [vmem:[#allocation10 + $0x2c] sm:$0xf] %v1269
    %1334 = vst [vmem:[#allocation10 + $0x30] sm:$0xf] %v1270
    %1335 = vst [vmem:[#allocation10 + $0x34] sm:$0xf] %v1271
    %1336 = vst [vmem:[#allocation10 + $0x38] sm:$0xf] %v1272
    %1337 = vst [vmem:[#allocation10 + $0x3c] sm:$0xf] %v1273
    %1338 = vst [vmem:[#allocation10 + $0x40] sm:$0xf] %v1274
    %1339 = vst [vmem:[#allocation10 + $0x44] sm:$0xf] %v1275
    %1340 = vst [vmem:[#allocation10 + $0x48] sm:$0xf] %v1276
    %1341 = vst [vmem:[#allocation10 + $0x4c] sm:$0xf] %v1277
    %1342 = vst [vmem:[#allocation10 + $0x50] sm:$0xf] %v1278
    %1343 = vst [vmem:[#allocation10 + $0x54] sm:$0xf] %v1279
    %1344 = vst [vmem:[#allocation10 + $0x58] sm:$0xf] %v1280
    %1345 = vst [vmem:[#allocation10 + $0x5c] sm:$0xf] %v1281
    %1346 = vst [vmem:[#allocation10 + $0x60] sm:$0xf] %v1282
    %1347 = vst [vmem:[#allocation10 + $0x64] sm:$0xf] %v1283
    %1348 = vst [vmem:[#allocation10 + $0x68] sm:$0xf] %v1284
    %1349 = vst [vmem:[#allocation10 + $0x6c] sm:$0xf] %v1285
    %1350 = vst [vmem:[#allocation10 + $0x70] sm:$0xf] %v1286
    %1351 = vst [vmem:[#allocation10 + $0x74] sm:$0xf] %v1287
    %1352 = vst [vmem:[#allocation10 + $0x78] sm:$0xf] %v1288
    %1353 = vst [vmem:[#allocation10 + $0x7c] sm:$0xf] %v1289
    // Predicated region
    $region22: #{tpu_custom_call.1} parent=1 // pred_check
      _
    $region23: #{tpu_custom_call.1} parent=1 // pred_check_branch
      %1355 = sbr.rel (0) target = $region25
    $region24: #{tpu_custom_call.1} parent=1 // pred_region
      %s1357 = ssub.s32 2048, 2048
      %1358 = vsyncadd [#allocation4], %s1357
      %s1359 = sshll.u32 [#allocation7], 4
      %s1360 = int_to_ptr.vmem [resolvable:$true] %s1359
      %1365 = dma.vmem_to_hbm [thread:$0]  %s1360, 2048, %s3, [#allocation4], 64, 64, 4
    $region25: #{tpu_custom_call.1} parent=1 // pred_fallthru
      _
    // Predicated region
    $region26: #{tpu_custom_call.1} parent=1 // pred_check
      _
    $region27: #{tpu_custom_call.1} parent=1 // pred_check_branch
      %1367 = sbr.rel (0) target = $region29
    $region28: #{tpu_custom_call.1} parent=1 // pred_region
      %s1369 = ssub.s32 2048, 2048
      %1370 = vsyncadd [#allocation9], %s1369
      %s1371 = sshll.u32 [#allocation8], 4
      %s1372 = int_to_ptr.vmem [resolvable:$true] %s1371
      %1377 = dma.vmem_to_hbm [thread:$0]  %s1372, 2048, %s4, [#allocation9], 64, 64, 4
    $region29: #{tpu_custom_call.1} parent=1 // pred_fallthru
      _
    // Predicated region
    $region30: #{tpu_custom_call.1} parent=1 // pred_check
      _
    $region31: #{tpu_custom_call.1} parent=1 // pred_check_branch
      %1379 = sbr.rel (0) target = $region33
    $region32: #{tpu_custom_call.1} parent=1 // pred_region
      %s1381 = ssub.s32 2048, 2048
      %1382 = vsyncadd [#allocation9], %s1381
      %s1383 = sshll.u32 [#allocation10], 4
      %s1384 = int_to_ptr.vmem [resolvable:$true] %s1383
      %1389 = dma.vmem_to_hbm [thread:$0]  %s1384, 2048, %s5, [#allocation9], 64, 64, 4
    $region33: #{tpu_custom_call.1} parent=1 // pred_fallthru
      _
    // Predicated region
    $region34: #{tpu_custom_call.1} parent=1 // pred_check
      _
    $region35: #{tpu_custom_call.1} parent=1 // pred_check_branch
      %1391 = sbr.rel (0) target = $region37
    $region36: #{tpu_custom_call.1} parent=1 // pred_region
      %1392 = dma.done [#allocation4], 2048
    $region37: #{tpu_custom_call.1} parent=1 // pred_fallthru
      _
    // Predicated region
    $region38: #{tpu_custom_call.1} parent=1 // pred_check
      _
    $region39: #{tpu_custom_call.1} parent=1 // pred_check_branch
      %1394 = sbr.rel (0) target = $region41
    $region40: #{tpu_custom_call.1} parent=1 // pred_region
      %1395 = dma.done [#allocation9], 2048
    $region41: #{tpu_custom_call.1} parent=1 // pred_fallthru
      _
    // Predicated region
    $region42: #{tpu_custom_call.1} parent=1 // pred_check
      _
    $region43: #{tpu_custom_call.1} parent=1 // pred_check_branch
      %1397 = sbr.rel (0) target = $region45
    $region44: #{tpu_custom_call.1} parent=1 // pred_region
      %1398 = dma.done [#allocation9], 2048
    $region45: #{tpu_custom_call.1} parent=1 // pred_fallthru
      _
    %1399 = vsyncpa [#allocation3], 1
    %1400 = vsyncpa [#allocation6], 1
    %1401 = vsyncpa [#allocation4], 1
    %1402 = vsyncpa [#allocation9], 1

</llo_original>
